<compile_context>
chip_gen: v7x
topology: tpu7x:2x2x1
jax: 0.10.0
libtpu: 0.0.40
codegen_flags: <defaults>
</compile_context>

<pallas_src>
import jax
import jax.numpy as jnp
import numpy as np
from jax import lax
from jax.experimental import pallas as pl
from jax.experimental.pallas import tpu as pltpu


def _round_up(n, m):
    return ((n + m - 1) // m) * m


def _emfc_kernel_factory(norm: bool):
    def kernel(x_ref, w1t_ref, b1_ref, muyt_ref, out1_ref, out2_ref):
        x = x_ref[...]          # (tm, K_pad)
        w1t = w1t_ref[...]      # (K_pad, H_pad)   (pre-transposed, VMEM-resident)
        b1 = b1_ref[...]        # (1, H_pad)
        muyt = muyt_ref[...]    # (H_pad, C_pad)   (pre-transposed, VMEM-resident)

        # fc1: x @ W1^T + b1   (RHS already laid out (K, N) -> direct MXU feed)
        out1 = jnp.dot(x, w1t, preferred_element_type=jnp.float32) + b1  # (tm, H_pad)
        out1_ref[...] = out1.astype(out1_ref.dtype)

        if norm:
            # L2-normalize over feature dim; matches torch F.normalize(eps=1e-12).
            # sqrt(max(sumsq, eps^2)) == max(sqrt(sumsq), eps); rsqrt runs on the EUP.
            sumsq = jnp.sum(out1 * out1, axis=1, keepdims=True)
            feat = out1 * lax.rsqrt(jnp.maximum(sumsq, 1e-24))
        else:
            feat = out1

        h = jnp.maximum(feat, 0.0)  # relu
        out2 = jnp.dot(h, muyt, preferred_element_type=jnp.float32)      # (tm, C_pad)
        out2_ref[...] = out2.astype(out2_ref.dtype)

    return kernel


def sequential_emfc_forward(x, w1, b1, mu_y, norm=False, tm_max=512):
    """x: (B, in_dim), w1: (hid, in_dim), b1: (hid,), mu_y: (C, hid) -> (out1, out2)."""
    B, in_dim = x.shape
    hid = w1.shape[0]
    C = mu_y.shape[0]

    # --- layout plumbing (outside the kernel, cheap XLA pads/transposes) ---
    K_pad = _round_up(in_dim, 128)
    H_pad = _round_up(hid, 128)
    C_pad = _round_up(C, 128)
    B8 = _round_up(B, 8)
    tm = min(tm_max, B8)          # batch tile (rows per grid step)
    B_pad = _round_up(B8, tm)

    f32 = jnp.float32
    xp = jnp.zeros((B_pad, K_pad), f32).at[:B, :in_dim].set(x.astype(f32))
    w1t = jnp.zeros((K_pad, H_pad), f32).at[:in_dim, :hid].set(w1.T.astype(f32))
    b1p = jnp.zeros((1, H_pad), f32).at[0, :hid].set(b1.astype(f32))
    muyt = jnp.zeros((H_pad, C_pad), f32).at[:hid, :C].set(mu_y.T.astype(f32))

    grid = (B_pad // tm,)

    # VMEM budget: double-buffered x/out1/out2 tiles + resident weights (f32 bytes).
    vmem_needed = 4 * (2 * tm * (K_pad + H_pad + C_pad)
                       + K_pad * H_pad + H_pad + H_pad * C_pad)
    vmem_limit = int(min(max(4 * vmem_needed, 32 << 20), 48 << 20))  # fits v7x's 64 MiB

    flops = 2 * B_pad * (K_pad * H_pad + H_pad * C_pad)
    bytes_accessed = 4 * (B_pad * K_pad + K_pad * H_pad + H_pad + H_pad * C_pad
                          + B_pad * H_pad + B_pad * C_pad)
    transcendentals = B_pad if norm else 0

    kernel = _emfc_kernel_factory(norm)
    out1_p, out2_p = pl.pallas_call(
        kernel,
        out_shape=(
            jax.ShapeDtypeStruct((B_pad, H_pad), f32),
            jax.ShapeDtypeStruct((B_pad, C_pad), f32),
        ),
        grid=grid,
        in_specs=[
            pl.BlockSpec((tm, K_pad), lambda i: (i, 0)),       # x: tiled over batch
            pl.BlockSpec((K_pad, H_pad), lambda i: (0, 0)),    # W1^T: resident
            pl.BlockSpec((1, H_pad), lambda i: (0, 0)),        # bias: resident
            pl.BlockSpec((H_pad, C_pad), lambda i: (0, 0)),    # mu_y^T: resident
        ],
        out_specs=(
            pl.BlockSpec((tm, H_pad), lambda i: (i, 0)),
            pl.BlockSpec((tm, C_pad), lambda i: (i, 0)),
        ),
        compiler_params=pltpu.CompilerParams(
            dimension_semantics=("parallel",),
            vmem_limit_bytes=vmem_limit,
        ),
        cost_estimate=pl.CostEstimate(
            flops=flops, transcendentals=transcendentals, bytes_accessed=bytes_accessed
        ),
    )(xp, w1t, b1p, muyt)

    # Slice padding off.
    return out1_p[:B, :hid], out2_p[:B, :C]


def glorot(key, shape):
    """Glorot & Bengio init (uniform in [-r, r]), matching the PyTorch helper."""
    r = np.sqrt(6.0 / (shape[0] + shape[1]))
    return jax.random.uniform(key, shape, dtype=jnp.float32, minval=-r, maxval=r)


if __name__ == "__main__":
    # Small shapes consistent with the module.
    B, in_dim, hid_dim = 8, 32, 64
    num_classes, num_subclasses = 4, 6

    key = jax.random.PRNGKey(0)
    kx, kw1, kb1, kmy, kmz = jax.random.split(key, 5)

    x = jax.random.normal(kx, (B, in_dim), dtype=jnp.float32)

    # nn.Linear default init: U(-1/sqrt(in_dim), 1/sqrt(in_dim))
    lim = 1.0 / np.sqrt(in_dim)
    w1 = jax.random.uniform(kw1, (hid_dim, in_dim), dtype=jnp.float32,
                            minval=-lim, maxval=lim)
    b1 = jax.random.uniform(kb1, (hid_dim,), dtype=jnp.float32,
                            minval=-lim, maxval=lim)
    mu_y = glorot(kmy, (num_classes, hid_dim))
    mu_z = glorot(kmz, (num_subclasses, hid_dim))  # unused in forward (parity with module)

    # --- norm=False (module default) ---
    out1, out2 = sequential_emfc_forward(x, w1, b1, mu_y, norm=False)
    jax.block_until_ready((out1, out2))

    ref1 = x @ w1.T + b1
    ref2 = jnp.maximum(ref1, 0.0) @ mu_y.T
    assert out1.shape == (B, hid_dim) and out2.shape == (B, num_classes)
    np.testing.assert_allclose(np.asarray(out1), np.asarray(ref1), rtol=1e-5, atol=1e-5)
    np.testing.assert_allclose(np.asarray(out2), np.asarray(ref2), rtol=1e-5, atol=1e-5)

    # --- norm=True path ---
    out1n, out2n = sequential_emfc_forward(x, w1, b1, mu_y, norm=True)
    jax.block_until_ready((out1n, out2n))

    nrm = jnp.sqrt(jnp.sum(ref1 * ref1, axis=1, keepdims=True))
    feat = ref1 / jnp.maximum(nrm, 1e-12)
    ref2n = jnp.maximum(feat, 0.0) @ mu_y.T
    np.testing.assert_allclose(np.asarray(out1n), np.asarray(ref1), rtol=1e-5, atol=1e-5)
    np.testing.assert_allclose(np.asarray(out2n), np.asarray(ref2n), rtol=1e-4, atol=1e-4)

    print("KERNEL_OK")
</pallas_src>

<mosaic_0001>
module attributes {stable_mosaic.version = 11 : i64} {
  func.func @kernel(%arg0: i32, %arg1: memref<8x128xf32, #tpu.memory_space<vmem>>, %arg2: memref<128x128xf32, #tpu.memory_space<vmem>>, %arg3: memref<1x128xf32, #tpu.memory_space<vmem>>, %arg4: memref<128x128xf32, #tpu.memory_space<vmem>>, %arg5: memref<8x128xf32, #tpu.memory_space<vmem>>, %arg6: memref<8x128xf32, #tpu.memory_space<vmem>>) attributes {dimension_semantics = [#tpu.dimension_semantics<parallel>], iteration_bounds = array<i64: 1>, scalar_prefetch = 0 : i64, scratch_operands = 0 : i64, tpu.core_type = #tpu.core_type<tc>, window_params = [{transform_indices = @transform_0, window_bounds = array<i64: 8, 128>}, {pipeline_mode = #tpu.pipeline_mode<synchronous>, transform_indices = @transform_1, window_bounds = array<i64: 128, 128>}, {pipeline_mode = #tpu.pipeline_mode<synchronous>, transform_indices = @transform_2, window_bounds = array<i64: 1, 128>}, {pipeline_mode = #tpu.pipeline_mode<synchronous>, transform_indices = @transform_3, window_bounds = array<i64: 128, 128>}, {transform_indices = @transform_4, window_bounds = array<i64: 8, 128>}, {transform_indices = @transform_5, window_bounds = array<i64: 8, 128>}]} {
    %c0 = arith.constant 0 : index
    %c0_0 = arith.constant 0 : index
    %0 = vector.load %arg1[%c0, %c0_0] : memref<8x128xf32, #tpu.memory_space<vmem>>, vector<8x128xf32>
    %c0_1 = arith.constant 0 : index
    %c0_2 = arith.constant 0 : index
    %1 = vector.load %arg2[%c0_1, %c0_2] : memref<128x128xf32, #tpu.memory_space<vmem>>, vector<128x128xf32>
    %c0_3 = arith.constant 0 : index
    %c0_4 = arith.constant 0 : index
    %2 = vector.load %arg3[%c0_3, %c0_4] : memref<1x128xf32, #tpu.memory_space<vmem>>, vector<1x128xf32>
    %c0_5 = arith.constant 0 : index
    %c0_6 = arith.constant 0 : index
    %3 = vector.load %arg4[%c0_5, %c0_6] : memref<128x128xf32, #tpu.memory_space<vmem>>, vector<128x128xf32>
    %cst = arith.constant dense<0.000000e+00> : vector<8x128xf32>
    %4 = tpu.matmul %0, %1, %cst {dimension_numbers = #tpu.dot_dimension_numbers<[1], [0], [0], [1], [0, 0, 1, 1], [], []>} : vector<8x128xf32>, vector<128x128xf32>, vector<8x128xf32> -> vector<8x128xf32>
    %5 = vector.broadcast %2 : vector<1x128xf32> to vector<8x128xf32>
    %6 = arith.addf %4, %5 : vector<8x128xf32>
    %c0_7 = arith.constant 0 : index
    %c0_8 = arith.constant 0 : index
    %7 = vector.load %arg5[%c0_7, %c0_8] : memref<8x128xf32, #tpu.memory_space<vmem>>, vector<8x128xf32>
    tpu.vector_store %arg5[%c0_7, %c0_8], %6 {strides = array<i32>} : memref<8x128xf32, #tpu.memory_space<vmem>>, vector<8x128xf32>,
    %cst_9 = arith.constant 0.000000e+00 : f32
    %8 = vector.broadcast %cst_9 : f32 to vector<8x128xf32>
    %9 = arith.maximumf %6, %8 : vector<8x128xf32>
    %cst_10 = arith.constant dense<0.000000e+00> : vector<8x128xf32>
    %10 = tpu.matmul %9, %3, %cst_10 {dimension_numbers = #tpu.dot_dimension_numbers<[1], [0], [0], [1], [0, 0, 1, 1], [], []>} : vector<8x128xf32>, vector<128x128xf32>, vector<8x128xf32> -> vector<8x128xf32>
    %c0_11 = arith.constant 0 : index
    %c0_12 = arith.constant 0 : index
    %11 = vector.load %arg6[%c0_11, %c0_12] : memref<8x128xf32, #tpu.memory_space<vmem>>, vector<8x128xf32>
    tpu.vector_store %arg6[%c0_11, %c0_12], %10 {strides = array<i32>} : memref<8x128xf32, #tpu.memory_space<vmem>>, vector<8x128xf32>,
    return
  }
  func.func @transform_0(%arg0: i32) -> (i32, i32) {
    %c0_i32 = arith.constant 0 : i32
    %c0_i32_0 = arith.constant 0 : i32
    return %arg0, %c0_i32 : i32, i32
  }
  func.func @transform_1(%arg0: i32) -> (i32, i32) {
    %c0_i32 = arith.constant 0 : i32
    %c0_i32_0 = arith.constant 0 : i32
    %c0_i32_1 = arith.constant 0 : i32
    return %c0_i32, %c0_i32_0 : i32, i32
  }
  func.func @transform_2(%arg0: i32) -> (i32, i32) {
    %c0_i32 = arith.constant 0 : i32
    %c0_i32_0 = arith.constant 0 : i32
    %c0_i32_1 = arith.constant 0 : i32
    return %c0_i32, %c0_i32_0 : i32, i32
  }
  func.func @transform_3(%arg0: i32) -> (i32, i32) {
    %c0_i32 = arith.constant 0 : i32
    %c0_i32_0 = arith.constant 0 : i32
    %c0_i32_1 = arith.constant 0 : i32
    return %c0_i32, %c0_i32_0 : i32, i32
  }
  func.func @transform_4(%arg0: i32) -> (i32, i32) {
    %c0_i32 = arith.constant 0 : i32
    %c0_i32_0 = arith.constant 0 : i32
    return %arg0, %c0_i32 : i32, i32
  }
  func.func @transform_5(%arg0: i32) -> (i32, i32) {
    %c0_i32 = arith.constant 0 : i32
    %c0_i32_0 = arith.constant 0 : i32
    return %arg0, %c0_i32 : i32, i32
  }
}

</mosaic_0001>

<llo_original>
// kernel: tpu_custom_call.1
$region0: #{tpu_custom_call.1}
  #allocation0 [shape = 'u32[]', space=smem, size = 0x4, offset = 0x4, fixed_abs, tag = 'smem constant byte address 0x4 - core index']
  #allocation1 [shape = 'u32[144,128]{1,0:T(1,128)}', space=vmem, size = 0x12000, scoped, tag = 'internal scratch']
  %s0 = inlined_call_operand.hbm [shape: f32[8,128], index: 0, kind: input, shape index: {}]
  %s1 = inlined_call_operand.hbm [shape: f32[128,128], index: 1, kind: input, shape index: {}]
  %s2 = inlined_call_operand.vmem [shape: f32[1,128], index: 2, kind: input, shape index: {}]
  %s3 = inlined_call_operand.hbm [shape: f32[128,128], index: 3, kind: input, shape index: {}]
  %s4 = inlined_call_operand.hbm [shape: f32[8,128], index: 4, kind: output, shape index: {0}]
  %s5 = inlined_call_operand.hbm [shape: f32[8,128], index: 5, kind: output, shape index: {1}]
  %6 = xla_tuple %s4, %s5
  %s7 = sld [smem:[#allocation0]]
  $region46: #{tpu_custom_call.1} parent=0
    _
  %s9 = ssub.s32 1, %s7
  %s10 = scalar_select 0, %s9, %s7
  $region1: #{tpu_custom_call.1} parent=0
    #allocation2 [shape = 'u8[4096]{0}', space=vmem, size = 0x1000, scoped, tag = 'input window, operand 0, single buffered']
    #allocation3 [shape = 's32[1]{0}', space=sflag, size = 0x4, scoped, tag = 'scoped memory for tpu_custom_call.1']
    #allocation4 [shape = 's32[1]{0}', space=sflag, size = 0x4, scoped, tag = 'scoped memory for tpu_custom_call.1']
    #allocation5 [shape = 'u8[65536]{0}', space=vmem, size = 0x10000, scoped, tag = 'input window, operand 1, single buffered']
    #allocation6 [shape = 's32[1]{0}', space=sflag, size = 0x4, scoped, tag = 'scoped memory for tpu_custom_call.1']
    #allocation7 [shape = 'u8[65536]{0}', space=vmem, size = 0x10000, scoped, tag = 'input window, operand 3, single buffered']
    #allocation8 [shape = 'u8[4096]{0}', space=vmem, size = 0x1000, scoped, tag = 'output window, operand 0, single buffered']
    #allocation9 [shape = 'u8[4096]{0}', space=vmem, size = 0x1000, scoped, tag = 'output window, operand 1, single buffered']
    #allocation10 [shape = 's32[1]{0}', space=sflag, size = 0x4, scoped, tag = 'scoped memory for tpu_custom_call.1']
    %11 = vsyncpa [#allocation3], 0
    %12 = vsyncpa [#allocation6], 0
    %13 = vsyncpa [#allocation4], 0
    %14 = vsyncpa [#allocation10], 0
    // Predicated region
    $region2: #{tpu_custom_call.1} parent=1 // pred_check
      _
    $region3: #{tpu_custom_call.1} parent=1 // pred_check_branch
      %16 = sbr.rel (0) target = $region5
    $region4: #{tpu_custom_call.1} parent=1 // pred_region
      %s18 = ssub.s32 128, 128
      %19 = vsyncadd [#allocation3], %s18
      %s21 = sshll.u32 [#allocation2], 4
      %s22 = int_to_ptr.vmem [resolvable:$true] %s21
      %24 = dma.hbm_to_vmem [thread:$0]  %s0, 128, %s22, [#allocation3]
    $region5: #{tpu_custom_call.1} parent=1 // pred_fallthru
      _
    // Predicated region
    $region6: #{tpu_custom_call.1} parent=1 // pred_check
      _
    $region7: #{tpu_custom_call.1} parent=1 // pred_check_branch
      %26 = sbr.rel (0) target = $region9
    $region8: #{tpu_custom_call.1} parent=1 // pred_region
      %s28 = ssub.s32 2048, 2048
      %29 = vsyncadd [#allocation6], %s28
      %s30 = sshll.u32 [#allocation5], 4
      %s31 = int_to_ptr.vmem [resolvable:$true] %s30
      %36 = dma.hbm_to_vmem [thread:$0]  %s1, 2048, %s31, [#allocation6], 128, 128, 8
    $region9: #{tpu_custom_call.1} parent=1 // pred_fallthru
      _
    // Predicated region
    $region10: #{tpu_custom_call.1} parent=1 // pred_check
      _
    $region11: #{tpu_custom_call.1} parent=1 // pred_check_branch
      %38 = sbr.rel (0) target = $region13
    $region12: #{tpu_custom_call.1} parent=1 // pred_region
      _
    $region13: #{tpu_custom_call.1} parent=1 // pred_fallthru
      _
    // Predicated region
    $region14: #{tpu_custom_call.1} parent=1 // pred_check
      _
    $region15: #{tpu_custom_call.1} parent=1 // pred_check_branch
      %40 = sbr.rel (0) target = $region17
    $region16: #{tpu_custom_call.1} parent=1 // pred_region
      %s42 = ssub.s32 2048, 2048
      %43 = vsyncadd [#allocation6], %s42
      %s44 = sshll.u32 [#allocation7], 4
      %s45 = int_to_ptr.vmem [resolvable:$true] %s44
      %50 = dma.hbm_to_vmem [thread:$0]  %s3, 2048, %s45, [#allocation6], 128, 128, 8
    $region17: #{tpu_custom_call.1} parent=1 // pred_fallthru
      _
    // Predicated region
    $region18: #{tpu_custom_call.1} parent=1 // pred_check
      _
    $region19: #{tpu_custom_call.1} parent=1 // pred_check_branch
      %52 = sbr.rel (0) target = $region21
    $region20: #{tpu_custom_call.1} parent=1 // pred_region
      %53 = dma.done [#allocation3], 128
    $region21: #{tpu_custom_call.1} parent=1 // pred_fallthru
      _
    // Predicated region
    $region22: #{tpu_custom_call.1} parent=1 // pred_check
      _
    $region23: #{tpu_custom_call.1} parent=1 // pred_check_branch
      %55 = sbr.rel (0) target = $region25
    $region24: #{tpu_custom_call.1} parent=1 // pred_region
      %56 = dma.done [#allocation6], 2048
    $region25: #{tpu_custom_call.1} parent=1 // pred_fallthru
      _
    // Predicated region
    $region26: #{tpu_custom_call.1} parent=1 // pred_check
      _
    $region27: #{tpu_custom_call.1} parent=1 // pred_check_branch
      %58 = sbr.rel (0) target = $region29
    $region28: #{tpu_custom_call.1} parent=1 // pred_region
      %59 = dma.done [#allocation6], 2048
    $region29: #{tpu_custom_call.1} parent=1 // pred_fallthru
      _
    %v60 = vld [vmem:[#allocation2] sm:$0xff]
    %v61 = vld [vmem:[#allocation5] sm:$0xff]
    %v62 = vld [vmem:[#allocation5 + $0x8] sm:$0xff]
    %v63 = vld [vmem:[#allocation5 + $0x10] sm:$0xff]
    %v64 = vld [vmem:[#allocation5 + $0x18] sm:$0xff]
    %v65 = vld [vmem:[#allocation5 + $0x20] sm:$0xff]
    %v66 = vld [vmem:[#allocation5 + $0x28] sm:$0xff]
    %v67 = vld [vmem:[#allocation5 + $0x30] sm:$0xff]
    %v68 = vld [vmem:[#allocation5 + $0x38] sm:$0xff]
    %v69 = vld [vmem:[#allocation5 + $0x40] sm:$0xff]
    %v70 = vld [vmem:[#allocation5 + $0x48] sm:$0xff]
    %v71 = vld [vmem:[#allocation5 + $0x50] sm:$0xff]
    %v72 = vld [vmem:[#allocation5 + $0x58] sm:$0xff]
    %v73 = vld [vmem:[#allocation5 + $0x60] sm:$0xff]
    %v74 = vld [vmem:[#allocation5 + $0x68] sm:$0xff]
    %v75 = vld [vmem:[#allocation5 + $0x70] sm:$0xff]
    %v76 = vld [vmem:[#allocation5 + $0x78] sm:$0xff]
    %v77 = vld [vmem:[%s2] sm:$0x1]
    %v78 = vld [vmem:[#allocation7] sm:$0xff]
    %v79 = vld [vmem:[#allocation7 + $0x8] sm:$0xff]
    %v80 = vld [vmem:[#allocation7 + $0x10] sm:$0xff]
    %v81 = vld [vmem:[#allocation7 + $0x18] sm:$0xff]
    %v82 = vld [vmem:[#allocation7 + $0x20] sm:$0xff]
    %v83 = vld [vmem:[#allocation7 + $0x28] sm:$0xff]
    %v84 = vld [vmem:[#allocation7 + $0x30] sm:$0xff]
    %v85 = vld [vmem:[#allocation7 + $0x38] sm:$0xff]
    %v86 = vld [vmem:[#allocation7 + $0x40] sm:$0xff]
    %v87 = vld [vmem:[#allocation7 + $0x48] sm:$0xff]
    %v88 = vld [vmem:[#allocation7 + $0x50] sm:$0xff]
    %v89 = vld [vmem:[#allocation7 + $0x58] sm:$0xff]
    %v90 = vld [vmem:[#allocation7 + $0x60] sm:$0xff]
    %v91 = vld [vmem:[#allocation7 + $0x68] sm:$0xff]
    %v92 = vld [vmem:[#allocation7 + $0x70] sm:$0xff]
    %v93 = vld [vmem:[#allocation7 + $0x78] sm:$0xff]
    %v95 = vlaneseq
    %v96 = vshrl.u32 %v95, 7
    %v97 = vsub.s32 0, %v96
    %v98 = vrot.slane %v77, %v97
    %100 = vmatprep.subr.mxu0 0.0
    %101 = vmatpush1.msra.mxu0 %v61
    %102 = vmatprep.subr.mxu0 0.0
    %103 = vmatpush1.msra.mxu0 %v62
    %104 = vmatprep.subr.mxu0 0.0
    %105 = vmatpush1.msra.mxu0 %v63
    %106 = vmatprep.subr.mxu0 0.0
    %107 = vmatpush1.msra.mxu0 %v64
    %108 = vmatprep.subr.mxu0 0.0
    %109 = vmatpush1.msra.mxu0 %v65
    %110 = vmatprep.subr.mxu0 0.0
    %111 = vmatpush1.msra.mxu0 %v66
    %112 = vmatprep.subr.mxu0 0.0
    %113 = vmatpush1.msra.mxu0 %v67
    %114 = vmatprep.subr.mxu0 0.0
    %115 = vmatpush1.msra.mxu0 %v68
    %116 = vmatprep.subr.mxu0 0.0
    %117 = vmatpush1.msra.mxu0 %v69
    %118 = vmatprep.subr.mxu0 0.0
    %119 = vmatpush1.msra.mxu0 %v70
    %120 = vmatprep.subr.mxu0 0.0
    %121 = vmatpush1.msra.mxu0 %v71
    %122 = vmatprep.subr.mxu0 0.0
    %123 = vmatpush1.msra.mxu0 %v72
    %124 = vmatprep.subr.mxu0 0.0
    %125 = vmatpush1.msra.mxu0 %v73
    %126 = vmatprep.subr.mxu0 0.0
    %127 = vmatpush1.msra.mxu0 %v74
    %128 = vmatprep.subr.mxu0 0.0
    %129 = vmatpush1.msra.mxu0 %v75
    %130 = vmatprep.subr.mxu0 0.0
    %131 = vmatpush1.msra.mxu0 %v76
    %132 = vmatprep.subr.mxu0 0.0
    %133 = vmatpush1.msra.mxu0 0.0
    %134 = vmatprep.subr.mxu0 0.0
    %135 = vmatpush1.msra.mxu0 0.0
    %136 = vmatprep.subr.mxu0 0.0
    %137 = vmatpush1.msra.mxu0 0.0
    %138 = vmatprep.subr.mxu0 0.0
    %139 = vmatpush1.msra.mxu0 0.0
    %140 = vmatprep.subr.mxu0 0.0
    %141 = vmatpush1.msra.mxu0 0.0
    %142 = vmatprep.subr.mxu0 0.0
    %143 = vmatpush1.msra.mxu0 0.0
    %144 = vmatprep.subr.mxu0 0.0
    %145 = vmatpush1.msra.mxu0 0.0
    %146 = vmatprep.subr.mxu0 0.0
    %147 = vmatpush1.msra.mxu0 0.0
    %148 = vmatprep.subr.mxu0 0.0
    %149 = vmatpush1.msra.mxu0 0.0
    %150 = vmatprep.subr.mxu0 0.0
    %151 = vmatpush1.msra.mxu0 0.0
    %152 = vmatprep.subr.mxu0 0.0
    %153 = vmatpush1.msra.mxu0 0.0
    %154 = vmatprep.subr.mxu0 0.0
    %155 = vmatpush1.msra.mxu0 0.0
    %156 = vmatprep.subr.mxu0 0.0
    %157 = vmatpush1.msra.mxu0 0.0
    %158 = vmatprep.subr.mxu0 0.0
    %159 = vmatpush1.msra.mxu0 0.0
    %160 = vmatprep.subr.mxu0 0.0
    %161 = vmatpush1.msra.mxu0 0.0
    %162 = vmatprep.subr.mxu0 0.0
    %163 = vmatpush1.msra.mxu0 0.0
    %164 = vmatprep.mubr.f32.mxu0 0.0
    %165 = vmatmul.mubr.f32.gmra.mrb[0].mxu0 %v60
    %v166 = vpop.f32.mrb[0].mxu0
    %v167 = vadd.f32 %v98, %v166
    %v168 = vpop.f32.mrb[0].mxu0
    %169 = vdwg.mxu0
    %170 = vst [vmem:[#allocation8] sm:$0xff] %v167
    %v171 = vmax.f32 %v167, 0.0
    %172 = vmatprep.subr.mxu0 0.0
    %173 = vmatpush1.msra.mxu0 %v78
    %174 = vmatprep.subr.mxu0 0.0
    %175 = vmatpush1.msra.mxu0 %v79
    %176 = vmatprep.subr.mxu0 0.0
    %177 = vmatpush1.msra.mxu0 %v80
    %178 = vmatprep.subr.mxu0 0.0
    %179 = vmatpush1.msra.mxu0 %v81
    %180 = vmatprep.subr.mxu0 0.0
    %181 = vmatpush1.msra.mxu0 %v82
    %182 = vmatprep.subr.mxu0 0.0
    %183 = vmatpush1.msra.mxu0 %v83
    %184 = vmatprep.subr.mxu0 0.0
    %185 = vmatpush1.msra.mxu0 %v84
    %186 = vmatprep.subr.mxu0 0.0
    %187 = vmatpush1.msra.mxu0 %v85
    %188 = vmatprep.subr.mxu0 0.0
    %189 = vmatpush1.msra.mxu0 %v86
    %190 = vmatprep.subr.mxu0 0.0
    %191 = vmatpush1.msra.mxu0 %v87
    %192 = vmatprep.subr.mxu0 0.0
    %193 = vmatpush1.msra.mxu0 %v88
    %194 = vmatprep.subr.mxu0 0.0
    %195 = vmatpush1.msra.mxu0 %v89
    %196 = vmatprep.subr.mxu0 0.0
    %197 = vmatpush1.msra.mxu0 %v90
    %198 = vmatprep.subr.mxu0 0.0
    %199 = vmatpush1.msra.mxu0 %v91
    %200 = vmatprep.subr.mxu0 0.0
    %201 = vmatpush1.msra.mxu0 %v92
    %202 = vmatprep.subr.mxu0 0.0
    %203 = vmatpush1.msra.mxu0 %v93
    %204 = vmatprep.subr.mxu0 0.0
    %205 = vmatpush1.msra.mxu0 0.0
    %206 = vmatprep.subr.mxu0 0.0
    %207 = vmatpush1.msra.mxu0 0.0
    %208 = vmatprep.subr.mxu0 0.0
    %209 = vmatpush1.msra.mxu0 0.0
    %210 = vmatprep.subr.mxu0 0.0
    %211 = vmatpush1.msra.mxu0 0.0
    %212 = vmatprep.subr.mxu0 0.0
    %213 = vmatpush1.msra.mxu0 0.0
    %214 = vmatprep.subr.mxu0 0.0
    %215 = vmatpush1.msra.mxu0 0.0
    %216 = vmatprep.subr.mxu0 0.0
    %217 = vmatpush1.msra.mxu0 0.0
    %218 = vmatprep.subr.mxu0 0.0
    %219 = vmatpush1.msra.mxu0 0.0
    %220 = vmatprep.subr.mxu0 0.0
    %221 = vmatpush1.msra.mxu0 0.0
    %222 = vmatprep.subr.mxu0 0.0
    %223 = vmatpush1.msra.mxu0 0.0
    %224 = vmatprep.subr.mxu0 0.0
    %225 = vmatpush1.msra.mxu0 0.0
    %226 = vmatprep.subr.mxu0 0.0
    %227 = vmatpush1.msra.mxu0 0.0
    %228 = vmatprep.subr.mxu0 0.0
    %229 = vmatpush1.msra.mxu0 0.0
    %230 = vmatprep.subr.mxu0 0.0
    %231 = vmatpush1.msra.mxu0 0.0
    %232 = vmatprep.subr.mxu0 0.0
    %233 = vmatpush1.msra.mxu0 0.0
    %234 = vmatprep.subr.mxu0 0.0
    %235 = vmatpush1.msra.mxu0 0.0
    %236 = vmatprep.mubr.f32.mxu0 0.0
    %237 = vmatmul.mubr.f32.gmra.mrb[0].mxu0 %v171
    %v238 = vpop.f32.mrb[0].mxu0
    %v239 = vadd.f32 0.0, %v238
    %v240 = vpop.f32.mrb[0].mxu0
    %241 = vdwg.mxu0
    %242 = vst [vmem:[#allocation9] sm:$0xff] %v239
    // Predicated region
    $region30: #{tpu_custom_call.1} parent=1 // pred_check
      _
    $region31: #{tpu_custom_call.1} parent=1 // pred_check_branch
      %244 = sbr.rel (0) target = $region33
    $region32: #{tpu_custom_call.1} parent=1 // pred_region
      %s246 = ssub.s32 128, 128
      %247 = vsyncadd [#allocation4], %s246
      %s249 = sshll.u32 [#allocation8], 4
      %s250 = int_to_ptr.vmem [resolvable:$true] %s249
      %252 = dma.vmem_to_hbm [thread:$0]  %s250, 128, %s4, [#allocation4]
    $region33: #{tpu_custom_call.1} parent=1 // pred_fallthru
      _
    // Predicated region
    $region34: #{tpu_custom_call.1} parent=1 // pred_check
      _
    $region35: #{tpu_custom_call.1} parent=1 // pred_check_branch
      %254 = sbr.rel (0) target = $region37
    $region36: #{tpu_custom_call.1} parent=1 // pred_region
      %s256 = ssub.s32 128, 128
      %257 = vsyncadd [#allocation10], %s256
      %s259 = sshll.u32 [#allocation9], 4
      %s260 = int_to_ptr.vmem [resolvable:$true] %s259
      %262 = dma.vmem_to_hbm [thread:$0]  %s260, 128, %s5, [#allocation10]
    $region37: #{tpu_custom_call.1} parent=1 // pred_fallthru
      _
    // Predicated region
    $region38: #{tpu_custom_call.1} parent=1 // pred_check
      _
    $region39: #{tpu_custom_call.1} parent=1 // pred_check_branch
      %264 = sbr.rel (0) target = $region41
    $region40: #{tpu_custom_call.1} parent=1 // pred_region
      %265 = dma.done [#allocation4], 128
    $region41: #{tpu_custom_call.1} parent=1 // pred_fallthru
      _
    // Predicated region
    $region42: #{tpu_custom_call.1} parent=1 // pred_check
      _
    $region43: #{tpu_custom_call.1} parent=1 // pred_check_branch
      %267 = sbr.rel (0) target = $region45
    $region44: #{tpu_custom_call.1} parent=1 // pred_region
      %268 = dma.done [#allocation10], 128
    $region45: #{tpu_custom_call.1} parent=1 // pred_fallthru
      _
    %269 = vsyncpa [#allocation3], 1
    %270 = vsyncpa [#allocation6], 1
    %271 = vsyncpa [#allocation4], 1
    %272 = vsyncpa [#allocation10], 1

</llo_original>
